<compile_context>
chip_gen: v5e
topology: v5e:2x2
jax: 0.10.0
libtpu: 0.0.40
codegen_flags: <defaults>
</compile_context>

<pallas_src>
import jax
import jax.numpy as jnp
from jax.experimental import pallas as pl
from jax.experimental.pallas import tpu as pltpu


def eptm_kernel(x_ref, ctx_ref, mask4_ref, wlt_ref, wcb_ref, bcomb_ref,
                vblk_ref, idx_ref, p_ref):
    BT, S4 = mask4_ref.shape

    # One fused lane-dense pre-activation: input_linear (weight tiled per
    # position) + all four Conv1d(kernel=1)'s (block-diagonal per position).
    pre = (jnp.dot(x_ref[...], wlt_ref[...], preferred_element_type=jnp.float32)
           + jnp.dot(ctx_ref[...], wcb_ref[...], preferred_element_type=jnp.float32)
           + bcomb_ref[...])                                        # (BT, S*4H)
    t = jnp.tanh(pre)                                               # big tanh, lane-dense

    # Block-diagonal V reduction; columns already in torch's k*S+s flat order.
    att = jnp.dot(t, vblk_ref[...], preferred_element_type=jnp.float32)   # (BT, 4S)
    att = 10.0 * jnp.tanh(att)                                      # narrow tanh on (BT, 4S)

    # Mask AFTER the tanh (True == masked out). Large finite negative instead
    # of -inf keeps an all-masked row NaN-free.
    att = jnp.where(mask4_ref[...] == 0, att, jnp.float32(-1e30))

    # Softmax elided: max(softmax) == 1/sum(exp(att-amax)), argmax(softmax) ==
    # first-argmax(att). Exact divide (not approx vrcp) to hold the 1e-5 tol.
    amax = jnp.max(att, axis=1, keepdims=True)                      # (BT, 1)
    denom = jnp.sum(jnp.exp(att - amax), axis=1, keepdims=True)     # (BT, 1)

    lin = jax.lax.broadcasted_iota(jnp.int32, (BT, S4), 1)
    idx_ref[...] = jnp.min(jnp.where(att == amax, lin, jnp.int32(S4)),
                           axis=1, keepdims=True)
    p_ref[...] = 1.0 / denom


def _pack_params(params, seq_len):
    """Pre-transpose / pre-pack weights once, outside the kernel.

    TODO(synk): the per-position block-diagonal packing makes the V weight
    O(S^2 * H); intended for short pointer-net sequences -- for long S switch
    back to a per-position tiled layout.
    """
    S = seq_len
    H = params["wl"].shape[0]
    wl4 = jnp.tile(params["wl"].T, (1, 4))                                  # (H, 4H)
    bl4 = jnp.tile(params["bl"], (1, 4))                                    # (1, 4H)
    wcp = jnp.concatenate([params["wc"][k].T for k in range(4)], axis=1)    # (I, 4H)
    bcp = jnp.concatenate([params["bc"][k] for k in range(4)], axis=1)      # (1, 4H)

    wlt = jnp.tile(wl4, (1, S))                                             # (H, S*4H)
    wcb = jnp.kron(jnp.eye(S, dtype=jnp.float32), wcp)                      # (S*I, S*4H)
    bcomb = jnp.tile(bl4 + bcp, (1, S))                                     # (1, S*4H)

    # V block-diagonal; permute columns so output column j = k*S + s (torch order).
    v0 = jnp.kron(jnp.eye(4 * S, dtype=jnp.float32),
                  params["v"].reshape(H, 1))                                # (S*4H, 4S), col = s*4+k
    j = jnp.arange(4 * S)
    perm = (j % S) * 4 + (j // S)
    vblk = v0[:, perm]                                                      # (S*4H, 4S), col = k*S+s
    return wlt, wcb, bcomb, vblk


def _choose_bt(B):
    """Batch tile: >= 4 grid steps for large B (pipelining + v7x's 2 TCs)."""
    if B <= 128:
        return B
    bt = -(-B // 4)                 # cdiv(B, 4)
    bt = ((bt + 7) // 8) * 8        # sublane multiple
    return max(128, min(bt, 1024))


def eptm_forward(x, context, mask, params):
    B, S, I = context.shape
    H = x.shape[1]
    S4H = 4 * H * S
    S4 = 4 * S

    wlt, wcb, bcomb, vblk = _pack_params(params, S)
    ctx_flat = context.reshape(B, S * I)                       # contiguous lane-dense rows
    mask4_i32 = jnp.tile(mask.astype(jnp.int32), (1, 4))       # torch mask.repeat(1,4) order

    BT = _choose_bt(B)
    grid = (pl.cdiv(B, BT),)

    row_map = lambda i: (i, 0)
    const_map = lambda i: (0, 0)

    # Explicit VMEM budget (double-buffered inputs/outputs + weights + f32
    # intermediates), clamped to stay under v7x's 32 MiB default scoped VMEM.
    lane_row = 128 * 4
    est = (2 * BT * lane_row * 3                                     # x, ctx, mask4 (lane-padded, 2 bufs)
           + 2 * 2 * BT * lane_row                                   # idx, p outputs
           + 2 * 4 * (H * S4H + S * I * S4H + 8 * S4H + S4H * 128)   # packed weights
           + 3 * BT * S4H * 4                                        # pre / t intermediates
           + 4 * BT * lane_row)                                      # att / exp / iota temps
    vmem_limit = max(16 << 20, min(32 << 20, int(est * 1.3)))

    idx, p = pl.pallas_call(
        eptm_kernel,
        out_shape=(jax.ShapeDtypeStruct((B, 1), jnp.int32),
                   jax.ShapeDtypeStruct((B, 1), jnp.float32)),
        grid=grid,
        in_specs=[
            pl.BlockSpec((BT, H), row_map),          # x
            pl.BlockSpec((BT, S * I), row_map),      # context, lane-dense (B, S*I)
            pl.BlockSpec((BT, S4), row_map),         # mask tiled x4 (int32)
            pl.BlockSpec((H, S4H), const_map),       # input_linear weight, tiled per s
            pl.BlockSpec((S * I, S4H), const_map),   # conv weights, block-diag per s
            pl.BlockSpec((1, S4H), const_map),       # combined biases
            pl.BlockSpec((S4H, S4), const_map),      # block-diagonal V
        ],
        out_specs=(pl.BlockSpec((BT, 1), row_map),
                   pl.BlockSpec((BT, 1), row_map)),
        compiler_params=pltpu.CompilerParams(
            dimension_semantics=("parallel",),
            vmem_limit_bytes=vmem_limit),
    )(x, ctx_flat, mask4_i32, wlt, wcb, bcomb, vblk)

    # module returns (indices.unsqueeze(1), p.unsqueeze(1), original mask as bool)
    return idx, p, mask.astype(jnp.bool_)


def eptm_reference(x, context, mask, params):
    """Pure-JAX reference mirroring the PyTorch forward."""
    inp = x @ params["wl"].T + params["bl"]                   # (B, H)
    atts = []
    for k in range(4):
        ck = jnp.einsum('bsi,hi->bsh', context, params["wc"][k]) + params["bc"][k][None]
        t = jnp.tanh(inp[:, None, :] + ck)
        atts.append(jnp.einsum('bsh,h->bs', t, params["v"][0]))
    att = 10.0 * jnp.tanh(jnp.concatenate(atts, axis=1))
    att = jnp.where(jnp.tile(~mask, (1, 4)), att, -jnp.inf)
    ans = jax.nn.softmax(att, axis=1)
    return jnp.argmax(ans, axis=1)[:, None], jnp.max(ans, axis=1)[:, None]


def init_params(key, input_dim, hidden_dim):
    ks = jax.random.split(key, 6)
    lim_l = 1.0 / jnp.sqrt(hidden_dim)
    lim_c = 1.0 / jnp.sqrt(input_dim)
    return {
        "wl": jax.random.uniform(ks[0], (hidden_dim, hidden_dim), jnp.float32, -lim_l, lim_l),
        "bl": jax.random.uniform(ks[1], (1, hidden_dim), jnp.float32, -lim_l, lim_l),
        "wc": jax.random.uniform(ks[2], (4, hidden_dim, input_dim), jnp.float32, -lim_c, lim_c),
        "bc": jax.random.uniform(ks[3], (4, 1, hidden_dim), jnp.float32, -lim_c, lim_c),
        "v": jax.random.uniform(ks[4], (1, hidden_dim), jnp.float32, -lim_l, lim_l),
    }


if __name__ == "__main__":
    B, S = 2, 8          # batch, sequence length
    INPUT_DIM = 4        # input_dim  (context channels)
    HIDDEN_DIM = 32      # hidden_dim

    key = jax.random.PRNGKey(0)
    k_p, k_x, k_c, k_m = jax.random.split(key, 4)

    params = init_params(k_p, INPUT_DIM, HIDDEN_DIM)
    x = jax.random.normal(k_x, (B, HIDDEN_DIM), jnp.float32)
    context = jax.random.normal(k_c, (B, S, INPUT_DIM), jnp.float32)
    # mask: True == position is masked out (gets -inf). Keep at least one False per row.
    mask = jax.random.bernoulli(k_m, 0.3, (B, S))
    mask = mask.at[:, 0].set(False)

    idx, p, mask_out = eptm_forward(x, context, mask, params)
    jax.block_until_ready((idx, p, mask_out))

    idx_ref, p_ref = eptm_reference(x, context, mask, params)
    assert idx.shape == (B, 1) and p.shape == (B, 1) and mask_out.shape == (B, S)
    assert jnp.all(idx == idx_ref.astype(jnp.int32)), (idx, idx_ref)
    assert jnp.allclose(p, p_ref, atol=1e-5, rtol=1e-5), (p, p_ref)
    assert jnp.array_equal(mask_out, mask)

    print("KERNEL_OK")
</pallas_src>

<mosaic_0001>
module attributes {stable_mosaic.version = 11 : i64} {
  func.func @eptm_kernel(%arg0: i32, %arg1: memref<2x32xf32, #tpu.memory_space<vmem>>, %arg2: memref<2x32xf32, #tpu.memory_space<vmem>>, %arg3: memref<2x32xi32, #tpu.memory_space<vmem>>, %arg4: memref<32x1024xf32, #tpu.memory_space<vmem>>, %arg5: memref<32x1024xf32, #tpu.memory_space<vmem>>, %arg6: memref<1x1024xf32, #tpu.memory_space<vmem>>, %arg7: memref<1024x32xf32, #tpu.memory_space<vmem>>, %arg8: memref<2x1xi32, #tpu.memory_space<vmem>>, %arg9: memref<2x1xf32, #tpu.memory_space<vmem>>) attributes {dimension_semantics = [#tpu.dimension_semantics<parallel>], iteration_bounds = array<i64: 1>, scalar_prefetch = 0 : i64, scratch_operands = 0 : i64, tpu.core_type = #tpu.core_type<tc>, window_params = [{transform_indices = @transform_0, window_bounds = array<i64: 2, 32>}, {transform_indices = @transform_1, window_bounds = array<i64: 2, 32>}, {transform_indices = @transform_2, window_bounds = array<i64: 2, 32>}, {pipeline_mode = #tpu.pipeline_mode<synchronous>, transform_indices = @transform_3, window_bounds = array<i64: 32, 1024>}, {pipeline_mode = #tpu.pipeline_mode<synchronous>, transform_indices = @transform_4, window_bounds = array<i64: 32, 1024>}, {pipeline_mode = #tpu.pipeline_mode<synchronous>, transform_indices = @transform_5, window_bounds = array<i64: 1, 1024>}, {pipeline_mode = #tpu.pipeline_mode<synchronous>, transform_indices = @transform_6, window_bounds = array<i64: 1024, 32>}, {transform_indices = @transform_7, window_bounds = array<i64: 2, 1>}, {transform_indices = @transform_8, window_bounds = array<i64: 2, 1>}]} {
    %c0 = arith.constant 0 : index
    %c0_0 = arith.constant 0 : index
    %0 = vector.load %arg1[%c0, %c0_0] : memref<2x32xf32, #tpu.memory_space<vmem>>, vector<2x32xf32>
    %c0_1 = arith.constant 0 : index
    %c0_2 = arith.constant 0 : index
    %1 = vector.load %arg4[%c0_1, %c0_2] : memref<32x1024xf32, #tpu.memory_space<vmem>>, vector<32x1024xf32>
    %cst = arith.constant dense<0.000000e+00> : vector<2x1024xf32>
    %2 = tpu.matmul %0, %1, %cst {dimension_numbers = #tpu.dot_dimension_numbers<[1], [0], [0], [1], [0, 0, 1, 1], [], []>} : vector<2x32xf32>, vector<32x1024xf32>, vector<2x1024xf32> -> vector<2x1024xf32>
    %c0_3 = arith.constant 0 : index
    %c0_4 = arith.constant 0 : index
    %3 = vector.load %arg2[%c0_3, %c0_4] : memref<2x32xf32, #tpu.memory_space<vmem>>, vector<2x32xf32>
    %c0_5 = arith.constant 0 : index
    %c0_6 = arith.constant 0 : index
    %4 = vector.load %arg5[%c0_5, %c0_6] : memref<32x1024xf32, #tpu.memory_space<vmem>>, vector<32x1024xf32>
    %cst_7 = arith.constant dense<0.000000e+00> : vector<2x1024xf32>
    %5 = tpu.matmul %3, %4, %cst_7 {dimension_numbers = #tpu.dot_dimension_numbers<[1], [0], [0], [1], [0, 0, 1, 1], [], []>} : vector<2x32xf32>, vector<32x1024xf32>, vector<2x1024xf32> -> vector<2x1024xf32>
    %6 = arith.addf %2, %5 : vector<2x1024xf32>
    %c0_8 = arith.constant 0 : index
    %c0_9 = arith.constant 0 : index
    %7 = vector.load %arg6[%c0_8, %c0_9] : memref<1x1024xf32, #tpu.memory_space<vmem>>, vector<1x1024xf32>
    %8 = vector.broadcast %7 : vector<1x1024xf32> to vector<2x1024xf32>
    %9 = arith.addf %6, %8 : vector<2x1024xf32>
    %10 = math.tanh %9 : vector<2x1024xf32>
    %c0_10 = arith.constant 0 : index
    %c0_11 = arith.constant 0 : index
    %11 = vector.load %arg7[%c0_10, %c0_11] : memref<1024x32xf32, #tpu.memory_space<vmem>>, vector<1024x32xf32>
    %cst_12 = arith.constant dense<0.000000e+00> : vector<2x32xf32>
    %12 = tpu.matmul %10, %11, %cst_12 {dimension_numbers = #tpu.dot_dimension_numbers<[1], [0], [0], [1], [0, 0, 1, 1], [], []>} : vector<2x1024xf32>, vector<1024x32xf32>, vector<2x32xf32> -> vector<2x32xf32>
    %13 = math.tanh %12 : vector<2x32xf32>
    %cst_13 = arith.constant 1.000000e+01 : f32
    %14 = vector.broadcast %cst_13 : f32 to vector<2x32xf32>
    %15 = arith.mulf %14, %13 : vector<2x32xf32>
    %c0_14 = arith.constant 0 : index
    %c0_15 = arith.constant 0 : index
    %16 = vector.load %arg3[%c0_14, %c0_15] : memref<2x32xi32, #tpu.memory_space<vmem>>, vector<2x32xi32>
    %c0_i32 = arith.constant 0 : i32
    %17 = vector.broadcast %c0_i32 : i32 to vector<2x32xi32>
    %18 = arith.cmpi eq, %16, %17 : vector<2x32xi32>
    %cst_16 = arith.constant -1.000000e+30 : f32
    %19 = vector.broadcast %cst_16 : f32 to vector<2x32xf32>
    %20 = arith.select %18, %15, %19 : vector<2x32xi1>, vector<2x32xf32>
    %cst_17 = arith.constant dense<0xFF800000> : vector<2xf32>
    %21 = vector.multi_reduction <maximumf>, %20, %cst_17 [1] : vector<2x32xf32> to vector<2xf32>
    %22 = vector.shape_cast %21 : vector<2xf32> to vector<2x1xf32>
    %23 = vector.broadcast %22 : vector<2x1xf32> to vector<2x32xf32>
    %24 = arith.subf %20, %23 : vector<2x32xf32>
    %25 = math.exp %24 : vector<2x32xf32>
    %cst_18 = arith.constant dense<0.000000e+00> : vector<2xf32>
    %26 = vector.multi_reduction <add>, %25, %cst_18 [1] : vector<2x32xf32> to vector<2xf32>
    %27 = vector.shape_cast %26 : vector<2xf32> to vector<2x1xf32>
    %28 = tpu.iota {dimensions = array<i32: 1>} : vector<2x32xi32>
    %29 = vector.broadcast %22 : vector<2x1xf32> to vector<2x32xf32>
    %30 = arith.cmpf oeq, %20, %29 : vector<2x32xf32>
    %c32_i32 = arith.constant 32 : i32
    %31 = vector.broadcast %c32_i32 : i32 to vector<2x32xi32>
    %32 = arith.select %30, %28, %31 : vector<2x32xi1>, vector<2x32xi32>
    %cst_19 = arith.constant dense<2147483647> : vector<2xi32>
    %33 = vector.multi_reduction <minsi>, %32, %cst_19 [1] : vector<2x32xi32> to vector<2xi32>
    %34 = vector.shape_cast %33 : vector<2xi32> to vector<2x1xi32>
    %c0_20 = arith.constant 0 : index
    %c0_21 = arith.constant 0 : index
    %35 = vector.load %arg8[%c0_20, %c0_21] : memref<2x1xi32, #tpu.memory_space<vmem>>, vector<2x1xi32>
    tpu.vector_store %arg8[%c0_20, %c0_21], %34 {strides = array<i32>} : memref<2x1xi32, #tpu.memory_space<vmem>>, vector<2x1xi32>,
    %cst_22 = arith.constant 1.000000e+00 : f32
    %36 = vector.broadcast %cst_22 : f32 to vector<2x1xf32>
    %37 = arith.divf %36, %27 : vector<2x1xf32>
    %c0_23 = arith.constant 0 : index
    %c0_24 = arith.constant 0 : index
    %38 = vector.load %arg9[%c0_23, %c0_24] : memref<2x1xf32, #tpu.memory_space<vmem>>, vector<2x1xf32>
    tpu.vector_store %arg9[%c0_23, %c0_24], %37 {strides = array<i32>} : memref<2x1xf32, #tpu.memory_space<vmem>>, vector<2x1xf32>,
    return
  }
  func.func @transform_0(%arg0: i32) -> (i32, i32) {
    %c0_i32 = arith.constant 0 : i32
    %c0_i32_0 = arith.constant 0 : i32
    return %arg0, %c0_i32 : i32, i32
  }
  func.func @transform_1(%arg0: i32) -> (i32, i32) {
    %c0_i32 = arith.constant 0 : i32
    %c0_i32_0 = arith.constant 0 : i32
    return %arg0, %c0_i32 : i32, i32
  }
  func.func @transform_2(%arg0: i32) -> (i32, i32) {
    %c0_i32 = arith.constant 0 : i32
    %c0_i32_0 = arith.constant 0 : i32
    return %arg0, %c0_i32 : i32, i32
  }
  func.func @transform_3(%arg0: i32) -> (i32, i32) {
    %c0_i32 = arith.constant 0 : i32
    %c0_i32_0 = arith.constant 0 : i32
    %c0_i32_1 = arith.constant 0 : i32
    return %c0_i32, %c0_i32_0 : i32, i32
  }
  func.func @transform_4(%arg0: i32) -> (i32, i32) {
    %c0_i32 = arith.constant 0 : i32
    %c0_i32_0 = arith.constant 0 : i32
    %c0_i32_1 = arith.constant 0 : i32
    return %c0_i32, %c0_i32_0 : i32, i32
  }
  func.func @transform_5(%arg0: i32) -> (i32, i32) {
    %c0_i32 = arith.constant 0 : i32
    %c0_i32_0 = arith.constant 0 : i32
    %c0_i32_1 = arith.constant 0 : i32
    return %c0_i32, %c0_i32_0 : i32, i32
  }
  func.func @transform_6(%arg0: i32) -> (i32, i32) {
    %c0_i32 = arith.constant 0 : i32
    %c0_i32_0 = arith.constant 0 : i32
    %c0_i32_1 = arith.constant 0 : i32
    return %c0_i32, %c0_i32_0 : i32, i32
  }
  func.func @transform_7(%arg0: i32) -> (i32, i32) {
    %c0_i32 = arith.constant 0 : i32
    %c0_i32_0 = arith.constant 0 : i32
    return %arg0, %c0_i32 : i32, i32
  }
  func.func @transform_8(%arg0: i32) -> (i32, i32) {
    %c0_i32 = arith.constant 0 : i32
    %c0_i32_0 = arith.constant 0 : i32
    return %arg0, %c0_i32 : i32, i32
  }
}

</mosaic_0001>

<llo_original>
// kernel: tpu_custom_call.1
$region0: #{tpu_custom_call.1}
  #allocation0 [shape = 'u32[]', space=smem, size = 0x4, offset = 0x4, fixed_abs, tag = 'smem constant byte address 0x4 - core index']
  #allocation1 [shape = 'u32[72,128]{1,0:T(1,128)}', space=vmem, size = 0x9000, scoped, tag = 'internal scratch']
  %s0 = inlined_call_operand.vmem [shape: f32[2,32], index: 0, kind: input, shape index: {}]
  %s1 = inlined_call_operand.vmem [shape: f32[2,32], index: 1, kind: input, shape index: {}]
  %s2 = inlined_call_operand.vmem [shape: s32[2,32], index: 2, kind: input, shape index: {}]
  %s3 = inlined_call_operand.vmem [shape: f32[32,1024], index: 3, kind: input, shape index: {}]
  %s4 = inlined_call_operand.vmem [shape: f32[32,1024], index: 4, kind: input, shape index: {}]
  %s5 = inlined_call_operand.vmem [shape: f32[1,1024], index: 5, kind: input, shape index: {}]
  %s6 = inlined_call_operand.vmem [shape: f32[1024,32], index: 6, kind: input, shape index: {}]
  %s7 = inlined_call_operand.vmem [shape: s32[2,1], index: 7, kind: output, shape index: {0}]
  %s8 = inlined_call_operand.vmem [shape: f32[2,1], index: 8, kind: output, shape index: {1}]
  %9 = xla_tuple %s7, %s8
  %s10 = sld [smem:[#allocation0]]
  $region46: #{tpu_custom_call.1} parent=0
    _
  %s12 = ssub.s32 1, %s10
  %s13 = scalar_select 0, %s12, %s10
  // Predicated region
  $region2: #{tpu_custom_call.1} parent=0 // pred_check
    _
  $region3: #{tpu_custom_call.1} parent=0 // pred_check_branch
    %15 = sbr.rel (0) target = $region5
  $region4: #{tpu_custom_call.1} parent=0 // pred_region
    _
  $region5: #{tpu_custom_call.1} parent=0 // pred_fallthru
    _
  // Predicated region
  $region6: #{tpu_custom_call.1} parent=0 // pred_check
    _
  $region7: #{tpu_custom_call.1} parent=0 // pred_check_branch
    %17 = sbr.rel (0) target = $region9
  $region8: #{tpu_custom_call.1} parent=0 // pred_region
    _
  $region9: #{tpu_custom_call.1} parent=0 // pred_fallthru
    _
  // Predicated region
  $region10: #{tpu_custom_call.1} parent=0 // pred_check
    _
  $region11: #{tpu_custom_call.1} parent=0 // pred_check_branch
    %19 = sbr.rel (0) target = $region13
  $region12: #{tpu_custom_call.1} parent=0 // pred_region
    _
  $region13: #{tpu_custom_call.1} parent=0 // pred_fallthru
    _
  // Predicated region
  $region14: #{tpu_custom_call.1} parent=0 // pred_check
    _
  $region15: #{tpu_custom_call.1} parent=0 // pred_check_branch
    %21 = sbr.rel (0) target = $region17
  $region16: #{tpu_custom_call.1} parent=0 // pred_region
    _
  $region17: #{tpu_custom_call.1} parent=0 // pred_fallthru
    _
  // Predicated region
  $region18: #{tpu_custom_call.1} parent=0 // pred_check
    _
  $region19: #{tpu_custom_call.1} parent=0 // pred_check_branch
    %23 = sbr.rel (0) target = $region21
  $region20: #{tpu_custom_call.1} parent=0 // pred_region
    _
  $region21: #{tpu_custom_call.1} parent=0 // pred_fallthru
    _
  // Predicated region
  $region22: #{tpu_custom_call.1} parent=0 // pred_check
    _
  $region23: #{tpu_custom_call.1} parent=0 // pred_check_branch
    %25 = sbr.rel (0) target = $region25
  $region24: #{tpu_custom_call.1} parent=0 // pred_region
    _
  $region25: #{tpu_custom_call.1} parent=0 // pred_fallthru
    _
  // Predicated region
  $region26: #{tpu_custom_call.1} parent=0 // pred_check
    _
  $region27: #{tpu_custom_call.1} parent=0 // pred_check_branch
    %27 = sbr.rel (0) target = $region29
  $region28: #{tpu_custom_call.1} parent=0 // pred_region
    _
  $region29: #{tpu_custom_call.1} parent=0 // pred_fallthru
    _
  %v28 = vld [vmem:[%s0] sm:$0x3]
  %v29 = vld [vmem:[%s3] sm:$0xff]
  %v30 = vld [vmem:[%s3 + $0x8] sm:$0xff]
  %v31 = vld [vmem:[%s3 + $0x10] sm:$0xff]
  %v32 = vld [vmem:[%s3 + $0x18] sm:$0xff]
  %v33 = vld [vmem:[%s3 + $0x20] sm:$0xff]
  %v34 = vld [vmem:[%s3 + $0x28] sm:$0xff]
  %v35 = vld [vmem:[%s3 + $0x30] sm:$0xff]
  %v36 = vld [vmem:[%s3 + $0x38] sm:$0xff]
  %v37 = vld [vmem:[%s3 + $0x40] sm:$0xff]
  %v38 = vld [vmem:[%s3 + $0x48] sm:$0xff]
  %v39 = vld [vmem:[%s3 + $0x50] sm:$0xff]
  %v40 = vld [vmem:[%s3 + $0x58] sm:$0xff]
  %v41 = vld [vmem:[%s3 + $0x60] sm:$0xff]
  %v42 = vld [vmem:[%s3 + $0x68] sm:$0xff]
  %v43 = vld [vmem:[%s3 + $0x70] sm:$0xff]
  %v44 = vld [vmem:[%s3 + $0x78] sm:$0xff]
  %v45 = vld [vmem:[%s3 + $0x80] sm:$0xff]
  %v46 = vld [vmem:[%s3 + $0x88] sm:$0xff]
  %v47 = vld [vmem:[%s3 + $0x90] sm:$0xff]
  %v48 = vld [vmem:[%s3 + $0x98] sm:$0xff]
  %v49 = vld [vmem:[%s3 + $0xa0] sm:$0xff]
  %v50 = vld [vmem:[%s3 + $0xa8] sm:$0xff]
  %v51 = vld [vmem:[%s3 + $0xb0] sm:$0xff]
  %v52 = vld [vmem:[%s3 + $0xb8] sm:$0xff]
  %v53 = vld [vmem:[%s3 + $0xc0] sm:$0xff]
  %v54 = vld [vmem:[%s3 + $0xc8] sm:$0xff]
  %v55 = vld [vmem:[%s3 + $0xd0] sm:$0xff]
  %v56 = vld [vmem:[%s3 + $0xd8] sm:$0xff]
  %v57 = vld [vmem:[%s3 + $0xe0] sm:$0xff]
  %v58 = vld [vmem:[%s3 + $0xe8] sm:$0xff]
  %v59 = vld [vmem:[%s3 + $0xf0] sm:$0xff]
  %v60 = vld [vmem:[%s3 + $0xf8] sm:$0xff]
  %v61 = vld [vmem:[%s1] sm:$0x3]
  %v62 = vld [vmem:[%s4] sm:$0xff]
  %v63 = vld [vmem:[%s4 + $0x8] sm:$0xff]
  %v64 = vld [vmem:[%s4 + $0x10] sm:$0xff]
  %v65 = vld [vmem:[%s4 + $0x18] sm:$0xff]
  %v66 = vld [vmem:[%s4 + $0x20] sm:$0xff]
  %v67 = vld [vmem:[%s4 + $0x28] sm:$0xff]
  %v68 = vld [vmem:[%s4 + $0x30] sm:$0xff]
  %v69 = vld [vmem:[%s4 + $0x38] sm:$0xff]
  %v70 = vld [vmem:[%s4 + $0x40] sm:$0xff]
  %v71 = vld [vmem:[%s4 + $0x48] sm:$0xff]
  %v72 = vld [vmem:[%s4 + $0x50] sm:$0xff]
  %v73 = vld [vmem:[%s4 + $0x58] sm:$0xff]
  %v74 = vld [vmem:[%s4 + $0x60] sm:$0xff]
  %v75 = vld [vmem:[%s4 + $0x68] sm:$0xff]
  %v76 = vld [vmem:[%s4 + $0x70] sm:$0xff]
  %v77 = vld [vmem:[%s4 + $0x78] sm:$0xff]
  %v78 = vld [vmem:[%s4 + $0x80] sm:$0xff]
  %v79 = vld [vmem:[%s4 + $0x88] sm:$0xff]
  %v80 = vld [vmem:[%s4 + $0x90] sm:$0xff]
  %v81 = vld [vmem:[%s4 + $0x98] sm:$0xff]
  %v82 = vld [vmem:[%s4 + $0xa0] sm:$0xff]
  %v83 = vld [vmem:[%s4 + $0xa8] sm:$0xff]
  %v84 = vld [vmem:[%s4 + $0xb0] sm:$0xff]
  %v85 = vld [vmem:[%s4 + $0xb8] sm:$0xff]
  %v86 = vld [vmem:[%s4 + $0xc0] sm:$0xff]
  %v87 = vld [vmem:[%s4 + $0xc8] sm:$0xff]
  %v88 = vld [vmem:[%s4 + $0xd0] sm:$0xff]
  %v89 = vld [vmem:[%s4 + $0xd8] sm:$0xff]
  %v90 = vld [vmem:[%s4 + $0xe0] sm:$0xff]
  %v91 = vld [vmem:[%s4 + $0xe8] sm:$0xff]
  %v92 = vld [vmem:[%s4 + $0xf0] sm:$0xff]
  %v93 = vld [vmem:[%s4 + $0xf8] sm:$0xff]
  %vm94 = vcmask 261120
  %v96 = vsel %vm94, %v61, 0
  %98 = vmatpush.msra.mxu0 0.0
  %99 = vmatpush.msra.mxu0 0.0
  %100 = vmatpush.msra.mxu0 0.0
  %101 = vmatpush.msra.mxu0 0.0
  %102 = vmatpush.msra.mxu0 0.0
  %103 = vmatpush.msra.mxu0 0.0
  %104 = vmatpush.msra.mxu0 0.0
  %105 = vmatpush.msra.mxu0 0.0
  %106 = vmatpush.msra.mxu0 0.0
  %107 = vmatpush.msra.mxu0 0.0
  %108 = vmatpush.msra.mxu0 0.0
  %109 = vmatpush.msra.mxu0 0.0
  %110 = vmatpush.msra.mxu0 %v86
  %111 = vmatpush.msra.mxu0 %v78
  %112 = vmatpush.msra.mxu0 %v70
  %113 = vmatpush.msra.mxu0 %v62
  %114 = vmatmul.f32.gmra.mxu0 %v96
  %v115 = vpop.f32.mrf.mxu0
  %v116 = vadd.f32 0.0, %v115
  %117 = vdwg.mxu0
  %118 = vmatpush.msra.mxu0 0.0
  %119 = vmatpush.msra.mxu0 0.0
  %120 = vmatpush.msra.mxu0 0.0
  %121 = vmatpush.msra.mxu0 0.0
  %122 = vmatpush.msra.mxu0 0.0
  %123 = vmatpush.msra.mxu0 0.0
  %124 = vmatpush.msra.mxu0 0.0
  %125 = vmatpush.msra.mxu0 0.0
  %126 = vmatpush.msra.mxu0 0.0
  %127 = vmatpush.msra.mxu0 0.0
  %128 = vmatpush.msra.mxu0 0.0
  %129 = vmatpush.msra.mxu0 0.0
  %130 = vmatpush.msra.mxu0 %v87
  %131 = vmatpush.msra.mxu0 %v79
  %132 = vmatpush.msra.mxu0 %v71
  %133 = vmatpush.msra.mxu0 %v63
  %134 = vmatmul.f32.gmra.mxu0 %v96
  %v135 = vpop.f32.mrf.mxu0
  %v136 = vadd.f32 0.0, %v135
  %137 = vdwg.mxu0
  %138 = vmatpush.msra.mxu0 0.0
  %139 = vmatpush.msra.mxu0 0.0
  %140 = vmatpush.msra.mxu0 0.0
  %141 = vmatpush.msra.mxu0 0.0
  %142 = vmatpush.msra.mxu0 0.0
  %143 = vmatpush.msra.mxu0 0.0
  %144 = vmatpush.msra.mxu0 0.0
  %145 = vmatpush.msra.mxu0 0.0
  %146 = vmatpush.msra.mxu0 0.0
  %147 = vmatpush.msra.mxu0 0.0
  %148 = vmatpush.msra.mxu0 0.0
  %149 = vmatpush.msra.mxu0 0.0
  %150 = vmatpush.msra.mxu0 %v88
  %151 = vmatpush.msra.mxu0 %v80
  %152 = vmatpush.msra.mxu0 %v72
  %153 = vmatpush.msra.mxu0 %v64
  %154 = vmatmul.f32.gmra.mxu0 %v96
  %v155 = vpop.f32.mrf.mxu0
  %v156 = vadd.f32 0.0, %v155
  %157 = vdwg.mxu0
  %158 = vmatpush.msra.mxu0 0.0
  %159 = vmatpush.msra.mxu0 0.0
  %160 = vmatpush.msra.mxu0 0.0
  %161 = vmatpush.msra.mxu0 0.0
  %162 = vmatpush.msra.mxu0 0.0
  %163 = vmatpush.msra.mxu0 0.0
  %164 = vmatpush.msra.mxu0 0.0
  %165 = vmatpush.msra.mxu0 0.0
  %166 = vmatpush.msra.mxu0 0.0
  %167 = vmatpush.msra.mxu0 0.0
  %168 = vmatpush.msra.mxu0 0.0
  %169 = vmatpush.msra.mxu0 0.0
  %170 = vmatpush.msra.mxu0 %v89
  %171 = vmatpush.msra.mxu0 %v81
  %172 = vmatpush.msra.mxu0 %v73
  %173 = vmatpush.msra.mxu0 %v65
  %174 = vmatmul.f32.gmra.mxu0 %v96
  %v175 = vpop.f32.mrf.mxu0
  %v176 = vadd.f32 0.0, %v175
  %177 = vdwg.mxu0
  %178 = vmatpush.msra.mxu0 0.0
  %179 = vmatpush.msra.mxu0 0.0
  %180 = vmatpush.msra.mxu0 0.0
  %181 = vmatpush.msra.mxu0 0.0
  %182 = vmatpush.msra.mxu0 0.0
  %183 = vmatpush.msra.mxu0 0.0
  %184 = vmatpush.msra.mxu0 0.0
  %185 = vmatpush.msra.mxu0 0.0
  %186 = vmatpush.msra.mxu0 0.0
  %187 = vmatpush.msra.mxu0 0.0
  %188 = vmatpush.msra.mxu0 0.0
  %189 = vmatpush.msra.mxu0 0.0
  %190 = vmatpush.msra.mxu0 %v90
  %191 = vmatpush.msra.mxu0 %v82
  %192 = vmatpush.msra.mxu0 %v74
  %193 = vmatpush.msra.mxu0 %v66
  %194 = vmatmul.f32.gmra.mxu0 %v96
  %v195 = vpop.f32.mrf.mxu0
  %v196 = vadd.f32 0.0, %v195
  %197 = vdwg.mxu0
  %198 = vmatpush.msra.mxu0 0.0
  %199 = vmatpush.msra.mxu0 0.0
  %200 = vmatpush.msra.mxu0 0.0
  %201 = vmatpush.msra.mxu0 0.0
  %202 = vmatpush.msra.mxu0 0.0
  %203 = vmatpush.msra.mxu0 0.0
  %204 = vmatpush.msra.mxu0 0.0
  %205 = vmatpush.msra.mxu0 0.0
  %206 = vmatpush.msra.mxu0 0.0
  %207 = vmatpush.msra.mxu0 0.0
  %208 = vmatpush.msra.mxu0 0.0
  %209 = vmatpush.msra.mxu0 0.0
  %210 = vmatpush.msra.mxu0 %v91
  %211 = vmatpush.msra.mxu0 %v83
  %212 = vmatpush.msra.mxu0 %v75
  %213 = vmatpush.msra.mxu0 %v67
  %214 = vmatmul.f32.gmra.mxu0 %v96
  %v215 = vpop.f32.mrf.mxu0
  %v216 = vadd.f32 0.0, %v215
  %217 = vdwg.mxu0
  %218 = vmatpush.msra.mxu0 0.0
  %219 = vmatpush.msra.mxu0 0.0
  %220 = vmatpush.msra.mxu0 0.0
  %221 = vmatpush.msra.mxu0 0.0
  %222 = vmatpush.msra.mxu0 0.0
  %223 = vmatpush.msra.mxu0 0.0
  %224 = vmatpush.msra.mxu0 0.0
  %225 = vmatpush.msra.mxu0 0.0
  %226 = vmatpush.msra.mxu0 0.0
  %227 = vmatpush.msra.mxu0 0.0
  %228 = vmatpush.msra.mxu0 0.0
  %229 = vmatpush.msra.mxu0 0.0
  %230 = vmatpush.msra.mxu0 %v92
  %231 = vmatpush.msra.mxu0 %v84
  %232 = vmatpush.msra.mxu0 %v76
  %233 = vmatpush.msra.mxu0 %v68
  %234 = vmatmul.f32.gmra.mxu0 %v96
  %v235 = vpop.f32.mrf.mxu0
  %v236 = vadd.f32 0.0, %v235
  %237 = vdwg.mxu0
  %238 = vmatpush.msra.mxu0 0.0
  %239 = vmatpush.msra.mxu0 0.0
  %240 = vmatpush.msra.mxu0 0.0
  %241 = vmatpush.msra.mxu0 0.0
  %242 = vmatpush.msra.mxu0 0.0
  %243 = vmatpush.msra.mxu0 0.0
  %244 = vmatpush.msra.mxu0 0.0
  %245 = vmatpush.msra.mxu0 0.0
  %246 = vmatpush.msra.mxu0 0.0
  %247 = vmatpush.msra.mxu0 0.0
  %248 = vmatpush.msra.mxu0 0.0
  %249 = vmatpush.msra.mxu0 0.0
  %250 = vmatpush.msra.mxu0 %v93
  %251 = vmatpush.msra.mxu0 %v85
  %252 = vmatpush.msra.mxu0 %v77
  %253 = vmatpush.msra.mxu0 %v69
  %254 = vmatmul.f32.gmra.mxu0 %v96
  %v255 = vpop.f32.mrf.mxu0
  %v256 = vadd.f32 0.0, %v255
  %257 = vdwg.mxu0
  %v259 = vsel %vm94, %v28, 0
  %261 = vmatpush.msra.mxu0 0.0
  %262 = vmatpush.msra.mxu0 0.0
  %263 = vmatpush.msra.mxu0 0.0
  %264 = vmatpush.msra.mxu0 0.0
  %265 = vmatpush.msra.mxu0 0.0
  %266 = vmatpush.msra.mxu0 0.0
  %267 = vmatpush.msra.mxu0 0.0
  %268 = vmatpush.msra.mxu0 0.0
  %269 = vmatpush.msra.mxu0 0.0
  %270 = vmatpush.msra.mxu0 0.0
  %271 = vmatpush.msra.mxu0 0.0
  %272 = vmatpush.msra.mxu0 0.0
  %273 = vmatpush.msra.mxu0 %v53
  %274 = vmatpush.msra.mxu0 %v45
  %275 = vmatpush.msra.mxu0 %v37
  %276 = vmatpush.msra.mxu0 %v29
  %277 = vmatmul.f32.gmra.mxu0 %v259
  %v278 = vpop.f32.mrf.mxu0
  %v279 = vadd.f32 %v116, %v278
  %280 = vdwg.mxu0
  %281 = vmatpush.msra.mxu0 0.0
  %282 = vmatpush.msra.mxu0 0.0
  %283 = vmatpush.msra.mxu0 0.0
  %284 = vmatpush.msra.mxu0 0.0
  %285 = vmatpush.msra.mxu0 0.0
  %286 = vmatpush.msra.mxu0 0.0
  %287 = vmatpush.msra.mxu0 0.0
  %288 = vmatpush.msra.mxu0 0.0
  %289 = vmatpush.msra.mxu0 0.0
  %290 = vmatpush.msra.mxu0 0.0
  %291 = vmatpush.msra.mxu0 0.0
  %292 = vmatpush.msra.mxu0 0.0
  %293 = vmatpush.msra.mxu0 %v54
  %294 = vmatpush.msra.mxu0 %v46
  %295 = vmatpush.msra.mxu0 %v38
  %296 = vmatpush.msra.mxu0 %v30
  %297 = vmatmul.f32.gmra.mxu0 %v259
  %v298 = vpop.f32.mrf.mxu0
  %v299 = vadd.f32 %v136, %v298
  %300 = vdwg.mxu0
  %301 = vmatpush.msra.mxu0 0.0
  %302 = vmatpush.msra.mxu0 0.0
  %303 = vmatpush.msra.mxu0 0.0
  %304 = vmatpush.msra.mxu0 0.0
  %305 = vmatpush.msra.mxu0 0.0
  %306 = vmatpush.msra.mxu0 0.0
  %307 = vmatpush.msra.mxu0 0.0
  %308 = vmatpush.msra.mxu0 0.0
  %309 = vmatpush.msra.mxu0 0.0
  %310 = vmatpush.msra.mxu0 0.0
  %311 = vmatpush.msra.mxu0 0.0
  %312 = vmatpush.msra.mxu0 0.0
  %313 = vmatpush.msra.mxu0 %v55
  %314 = vmatpush.msra.mxu0 %v47
  %315 = vmatpush.msra.mxu0 %v39
  %316 = vmatpush.msra.mxu0 %v31
  %317 = vmatmul.f32.gmra.mxu0 %v259
  %v318 = vpop.f32.mrf.mxu0
  %v319 = vadd.f32 %v156, %v318
  %320 = vdwg.mxu0
  %321 = vmatpush.msra.mxu0 0.0
  %322 = vmatpush.msra.mxu0 0.0
  %323 = vmatpush.msra.mxu0 0.0
  %324 = vmatpush.msra.mxu0 0.0
  %325 = vmatpush.msra.mxu0 0.0
  %326 = vmatpush.msra.mxu0 0.0
  %327 = vmatpush.msra.mxu0 0.0
  %328 = vmatpush.msra.mxu0 0.0
  %329 = vmatpush.msra.mxu0 0.0
  %330 = vmatpush.msra.mxu0 0.0
  %331 = vmatpush.msra.mxu0 0.0
  %332 = vmatpush.msra.mxu0 0.0
  %333 = vmatpush.msra.mxu0 %v56
  %334 = vmatpush.msra.mxu0 %v48
  %335 = vmatpush.msra.mxu0 %v40
  %336 = vmatpush.msra.mxu0 %v32
  %337 = vmatmul.f32.gmra.mxu0 %v259
  %v338 = vpop.f32.mrf.mxu0
  %v339 = vadd.f32 %v176, %v338
  %340 = vdwg.mxu0
  %341 = vmatpush.msra.mxu0 0.0
  %342 = vmatpush.msra.mxu0 0.0
  %343 = vmatpush.msra.mxu0 0.0
  %344 = vmatpush.msra.mxu0 0.0
  %345 = vmatpush.msra.mxu0 0.0
  %346 = vmatpush.msra.mxu0 0.0
  %347 = vmatpush.msra.mxu0 0.0
  %348 = vmatpush.msra.mxu0 0.0
  %349 = vmatpush.msra.mxu0 0.0
  %350 = vmatpush.msra.mxu0 0.0
  %351 = vmatpush.msra.mxu0 0.0
  %352 = vmatpush.msra.mxu0 0.0
  %353 = vmatpush.msra.mxu0 %v57
  %354 = vmatpush.msra.mxu0 %v49
  %355 = vmatpush.msra.mxu0 %v41
  %356 = vmatpush.msra.mxu0 %v33
  %357 = vmatmul.f32.gmra.mxu0 %v259
  %v358 = vpop.f32.mrf.mxu0
  %v359 = vadd.f32 %v196, %v358
  %360 = vdwg.mxu0
  %361 = vmatpush.msra.mxu0 0.0
  %362 = vmatpush.msra.mxu0 0.0
  %363 = vmatpush.msra.mxu0 0.0
  %364 = vmatpush.msra.mxu0 0.0
  %365 = vmatpush.msra.mxu0 0.0
  %366 = vmatpush.msra.mxu0 0.0
  %367 = vmatpush.msra.mxu0 0.0
  %368 = vmatpush.msra.mxu0 0.0
  %369 = vmatpush.msra.mxu0 0.0
  %370 = vmatpush.msra.mxu0 0.0
  %371 = vmatpush.msra.mxu0 0.0
  %372 = vmatpush.msra.mxu0 0.0
  %373 = vmatpush.msra.mxu0 %v58
  %374 = vmatpush.msra.mxu0 %v50
  %375 = vmatpush.msra.mxu0 %v42
  %376 = vmatpush.msra.mxu0 %v34
  %377 = vmatmul.f32.gmra.mxu0 %v259
  %v378 = vpop.f32.mrf.mxu0
  %v379 = vadd.f32 %v216, %v378
  %380 = vdwg.mxu0
  %381 = vmatpush.msra.mxu0 0.0
  %382 = vmatpush.msra.mxu0 0.0
  %383 = vmatpush.msra.mxu0 0.0
  %384 = vmatpush.msra.mxu0 0.0
  %385 = vmatpush.msra.mxu0 0.0
  %386 = vmatpush.msra.mxu0 0.0
  %387 = vmatpush.msra.mxu0 0.0
  %388 = vmatpush.msra.mxu0 0.0
  %389 = vmatpush.msra.mxu0 0.0
  %390 = vmatpush.msra.mxu0 0.0
  %391 = vmatpush.msra.mxu0 0.0
  %392 = vmatpush.msra.mxu0 0.0
  %393 = vmatpush.msra.mxu0 %v59
  %394 = vmatpush.msra.mxu0 %v51
  %395 = vmatpush.msra.mxu0 %v43
  %396 = vmatpush.msra.mxu0 %v35
  %397 = vmatmul.f32.gmra.mxu0 %v259
  %v398 = vpop.f32.mrf.mxu0
  %v399 = vadd.f32 %v236, %v398
  %400 = vdwg.mxu0
  %401 = vmatpush.msra.mxu0 0.0
  %402 = vmatpush.msra.mxu0 0.0
  %403 = vmatpush.msra.mxu0 0.0
  %404 = vmatpush.msra.mxu0 0.0
  %405 = vmatpush.msra.mxu0 0.0
  %406 = vmatpush.msra.mxu0 0.0
  %407 = vmatpush.msra.mxu0 0.0
  %408 = vmatpush.msra.mxu0 0.0
  %409 = vmatpush.msra.mxu0 0.0
  %410 = vmatpush.msra.mxu0 0.0
  %411 = vmatpush.msra.mxu0 0.0
  %412 = vmatpush.msra.mxu0 0.0
  %413 = vmatpush.msra.mxu0 %v60
  %414 = vmatpush.msra.mxu0 %v52
  %415 = vmatpush.msra.mxu0 %v44
  %416 = vmatpush.msra.mxu0 %v36
  %417 = vmatmul.f32.gmra.mxu0 %v259
  %v418 = vpop.f32.mrf.mxu0
  %v419 = vadd.f32 %v256, %v418
  %420 = vdwg.mxu0
  %v421 = vld [vmem:[%s5] sm:$0xff]
  %v423 = vperm.slane %v421, 0
  %v424 = vperm.slane %v421, 1
  %v425 = vperm.slane %v421, 2
  %v426 = vperm.slane %v421, 3
  %v427 = vperm.slane %v421, 4
  %v428 = vperm.slane %v421, 5
  %v429 = vperm.slane %v421, 6
  %v430 = vperm.slane %v421, 7
  %v439 = vadd.f32 %v279, %v423
  %v440 = vadd.f32 %v299, %v424
  %v441 = vadd.f32 %v319, %v425
  %v442 = vadd.f32 %v339, %v426
  %v443 = vadd.f32 %v359, %v427
  %v444 = vadd.f32 %v379, %v428
  %v445 = vadd.f32 %v399, %v429
  %v446 = vadd.f32 %v419, %v430
  %v447 = vtanh.pop %v439
  %v448 = vtanh.pop %v440
  %v449 = vtanh.pop %v441
  %v450 = vtanh.pop %v442
  %v451 = vtanh.pop %v443
  %v452 = vtanh.pop %v444
  %v453 = vtanh.pop %v445
  %v454 = vtanh.pop %v446
  %v455 = vld [vmem:[%s6] sm:$0xff]
  %v456 = vld [vmem:[%s6 + $0x8] sm:$0xff]
  %v457 = vld [vmem:[%s6 + $0x10] sm:$0xff]
  %v458 = vld [vmem:[%s6 + $0x18] sm:$0xff]
  %v459 = vld [vmem:[%s6 + $0x20] sm:$0xff]
  %v460 = vld [vmem:[%s6 + $0x28] sm:$0xff]
  %v461 = vld [vmem:[%s6 + $0x30] sm:$0xff]
  %v462 = vld [vmem:[%s6 + $0x38] sm:$0xff]
  %v463 = vld [vmem:[%s6 + $0x40] sm:$0xff]
  %v464 = vld [vmem:[%s6 + $0x48] sm:$0xff]
  %v465 = vld [vmem:[%s6 + $0x50] sm:$0xff]
  %v466 = vld [vmem:[%s6 + $0x58] sm:$0xff]
  %v467 = vld [vmem:[%s6 + $0x60] sm:$0xff]
  %v468 = vld [vmem:[%s6 + $0x68] sm:$0xff]
  %v469 = vld [vmem:[%s6 + $0x70] sm:$0xff]
  %v470 = vld [vmem:[%s6 + $0x78] sm:$0xff]
  %v471 = vld [vmem:[%s6 + $0x80] sm:$0xff]
  %v472 = vld [vmem:[%s6 + $0x88] sm:$0xff]
  %v473 = vld [vmem:[%s6 + $0x90] sm:$0xff]
  %v474 = vld [vmem:[%s6 + $0x98] sm:$0xff]
  %v475 = vld [vmem:[%s6 + $0xa0] sm:$0xff]
  %v476 = vld [vmem:[%s6 + $0xa8] sm:$0xff]
  %v477 = vld [vmem:[%s6 + $0xb0] sm:$0xff]
  %v478 = vld [vmem:[%s6 + $0xb8] sm:$0xff]
  %v479 = vld [vmem:[%s6 + $0xc0] sm:$0xff]
  %v480 = vld [vmem:[%s6 + $0xc8] sm:$0xff]
  %v481 = vld [vmem:[%s6 + $0xd0] sm:$0xff]
  %v482 = vld [vmem:[%s6 + $0xd8] sm:$0xff]
  %v483 = vld [vmem:[%s6 + $0xe0] sm:$0xff]
  %v484 = vld [vmem:[%s6 + $0xe8] sm:$0xff]
  %v485 = vld [vmem:[%s6 + $0xf0] sm:$0xff]
  %v486 = vld [vmem:[%s6 + $0xf8] sm:$0xff]
  %v487 = vld [vmem:[%s6 + $0x100] sm:$0xff]
  %v488 = vld [vmem:[%s6 + $0x108] sm:$0xff]
  %v489 = vld [vmem:[%s6 + $0x110] sm:$0xff]
  %v490 = vld [vmem:[%s6 + $0x118] sm:$0xff]
  %v491 = vld [vmem:[%s6 + $0x120] sm:$0xff]
  %v492 = vld [vmem:[%s6 + $0x128] sm:$0xff]
  %v493 = vld [vmem:[%s6 + $0x130] sm:$0xff]
  %v494 = vld [vmem:[%s6 + $0x138] sm:$0xff]
  %v495 = vld [vmem:[%s6 + $0x140] sm:$0xff]
  %v496 = vld [vmem:[%s6 + $0x148] sm:$0xff]
  %v497 = vld [vmem:[%s6 + $0x150] sm:$0xff]
  %v498 = vld [vmem:[%s6 + $0x158] sm:$0xff]
  %v499 = vld [vmem:[%s6 + $0x160] sm:$0xff]
  %v500 = vld [vmem:[%s6 + $0x168] sm:$0xff]
  %v501 = vld [vmem:[%s6 + $0x170] sm:$0xff]
  %v502 = vld [vmem:[%s6 + $0x178] sm:$0xff]
  %v503 = vld [vmem:[%s6 + $0x180] sm:$0xff]
  %v504 = vld [vmem:[%s6 + $0x188] sm:$0xff]
  %v505 = vld [vmem:[%s6 + $0x190] sm:$0xff]
  %v506 = vld [vmem:[%s6 + $0x198] sm:$0xff]
  %v507 = vld [vmem:[%s6 + $0x1a0] sm:$0xff]
  %v508 = vld [vmem:[%s6 + $0x1a8] sm:$0xff]
  %v509 = vld [vmem:[%s6 + $0x1b0] sm:$0xff]
  %v510 = vld [vmem:[%s6 + $0x1b8] sm:$0xff]
  %v511 = vld [vmem:[%s6 + $0x1c0] sm:$0xff]
  %v512 = vld [vmem:[%s6 + $0x1c8] sm:$0xff]
  %v513 = vld [vmem:[%s6 + $0x1d0] sm:$0xff]
  %v514 = vld [vmem:[%s6 + $0x1d8] sm:$0xff]
  %v515 = vld [vmem:[%s6 + $0x1e0] sm:$0xff]
  %v516 = vld [vmem:[%s6 + $0x1e8] sm:$0xff]
  %v517 = vld [vmem:[%s6 + $0x1f0] sm:$0xff]
  %v518 = vld [vmem:[%s6 + $0x1f8] sm:$0xff]
  %v519 = vld [vmem:[%s6 + $0x200] sm:$0xff]
  %v520 = vld [vmem:[%s6 + $0x208] sm:$0xff]
  %v521 = vld [vmem:[%s6 + $0x210] sm:$0xff]
  %v522 = vld [vmem:[%s6 + $0x218] sm:$0xff]
  %v523 = vld [vmem:[%s6 + $0x220] sm:$0xff]
  %v524 = vld [vmem:[%s6 + $0x228] sm:$0xff]
  %v525 = vld [vmem:[%s6 + $0x230] sm:$0xff]
  %v526 = vld [vmem:[%s6 + $0x238] sm:$0xff]
  %v527 = vld [vmem:[%s6 + $0x240] sm:$0xff]
  %v528 = vld [vmem:[%s6 + $0x248] sm:$0xff]
  %v529 = vld [vmem:[%s6 + $0x250] sm:$0xff]
  %v530 = vld [vmem:[%s6 + $0x258] sm:$0xff]
  %v531 = vld [vmem:[%s6 + $0x260] sm:$0xff]
  %v532 = vld [vmem:[%s6 + $0x268] sm:$0xff]
  %v533 = vld [vmem:[%s6 + $0x270] sm:$0xff]
  %v534 = vld [vmem:[%s6 + $0x278] sm:$0xff]
  %v535 = vld [vmem:[%s6 + $0x280] sm:$0xff]
  %v536 = vld [vmem:[%s6 + $0x288] sm:$0xff]
  %v537 = vld [vmem:[%s6 + $0x290] sm:$0xff]
  %v538 = vld [vmem:[%s6 + $0x298] sm:$0xff]
  %v539 = vld [vmem:[%s6 + $0x2a0] sm:$0xff]
  %v540 = vld [vmem:[%s6 + $0x2a8] sm:$0xff]
  %v541 = vld [vmem:[%s6 + $0x2b0] sm:$0xff]
  %v542 = vld [vmem:[%s6 + $0x2b8] sm:$0xff]
  %v543 = vld [vmem:[%s6 + $0x2c0] sm:$0xff]
  %v544 = vld [vmem:[%s6 + $0x2c8] sm:$0xff]
  %v545 = vld [vmem:[%s6 + $0x2d0] sm:$0xff]
  %v546 = vld [vmem:[%s6 + $0x2d8] sm:$0xff]
  %v547 = vld [vmem:[%s6 + $0x2e0] sm:$0xff]
  %v548 = vld [vmem:[%s6 + $0x2e8] sm:$0xff]
  %v549 = vld [vmem:[%s6 + $0x2f0] sm:$0xff]
  %v550 = vld [vmem:[%s6 + $0x2f8] sm:$0xff]
  %v551 = vld [vmem:[%s6 + $0x300] sm:$0xff]
  %v552 = vld [vmem:[%s6 + $0x308] sm:$0xff]
  %v553 = vld [vmem:[%s6 + $0x310] sm:$0xff]
  %v554 = vld [vmem:[%s6 + $0x318] sm:$0xff]
  %v555 = vld [vmem:[%s6 + $0x320] sm:$0xff]
  %v556 = vld [vmem:[%s6 + $0x328] sm:$0xff]
  %v557 = vld [vmem:[%s6 + $0x330] sm:$0xff]
  %v558 = vld [vmem:[%s6 + $0x338] sm:$0xff]
  %v559 = vld [vmem:[%s6 + $0x340] sm:$0xff]
  %v560 = vld [vmem:[%s6 + $0x348] sm:$0xff]
  %v561 = vld [vmem:[%s6 + $0x350] sm:$0xff]
  %v562 = vld [vmem:[%s6 + $0x358] sm:$0xff]
  %v563 = vld [vmem:[%s6 + $0x360] sm:$0xff]
  %v564 = vld [vmem:[%s6 + $0x368] sm:$0xff]
  %v565 = vld [vmem:[%s6 + $0x370] sm:$0xff]
  %v566 = vld [vmem:[%s6 + $0x378] sm:$0xff]
  %v567 = vld [vmem:[%s6 + $0x380] sm:$0xff]
  %v568 = vld [vmem:[%s6 + $0x388] sm:$0xff]
  %v569 = vld [vmem:[%s6 + $0x390] sm:$0xff]
  %v570 = vld [vmem:[%s6 + $0x398] sm:$0xff]
  %v571 = vld [vmem:[%s6 + $0x3a0] sm:$0xff]
  %v572 = vld [vmem:[%s6 + $0x3a8] sm:$0xff]
  %v573 = vld [vmem:[%s6 + $0x3b0] sm:$0xff]
  %v574 = vld [vmem:[%s6 + $0x3b8] sm:$0xff]
  %v575 = vld [vmem:[%s6 + $0x3c0] sm:$0xff]
  %v576 = vld [vmem:[%s6 + $0x3c8] sm:$0xff]
  %v577 = vld [vmem:[%s6 + $0x3d0] sm:$0xff]
  %v578 = vld [vmem:[%s6 + $0x3d8] sm:$0xff]
  %v579 = vld [vmem:[%s6 + $0x3e0] sm:$0xff]
  %v580 = vld [vmem:[%s6 + $0x3e8] sm:$0xff]
  %v581 = vld [vmem:[%s6 + $0x3f0] sm:$0xff]
  %v582 = vld [vmem:[%s6 + $0x3f8] sm:$0xff]
  %583 = vmatpush.msra.mxu0 %v470
  %584 = vmatpush.msra.mxu0 %v469
  %585 = vmatpush.msra.mxu0 %v468
  %586 = vmatpush.msra.mxu0 %v467
  %587 = vmatpush.msra.mxu0 %v466
  %588 = vmatpush.msra.mxu0 %v465
  %589 = vmatpush.msra.mxu0 %v464
  %590 = vmatpush.msra.mxu0 %v463
  %591 = vmatpush.msra.mxu0 %v462
  %592 = vmatpush.msra.mxu0 %v461
  %593 = vmatpush.msra.mxu0 %v460
  %594 = vmatpush.msra.mxu0 %v459
  %595 = vmatpush.msra.mxu0 %v458
  %596 = vmatpush.msra.mxu0 %v457
  %597 = vmatpush.msra.mxu0 %v456
  %598 = vmatpush.msra.mxu0 %v455
  %599 = vmatmul.f32.gmra.mxu0 %v447
  %v600 = vpop.f32.mrf.mxu0
  %v601 = vadd.f32 0.0, %v600
  %602 = vdwg.mxu0
  %603 = vmatpush.msra.mxu0 %v486
  %604 = vmatpush.msra.mxu0 %v485
  %605 = vmatpush.msra.mxu0 %v484
  %606 = vmatpush.msra.mxu0 %v483
  %607 = vmatpush.msra.mxu0 %v482
  %608 = vmatpush.msra.mxu0 %v481
  %609 = vmatpush.msra.mxu0 %v480
  %610 = vmatpush.msra.mxu0 %v479
  %611 = vmatpush.msra.mxu0 %v478
  %612 = vmatpush.msra.mxu0 %v477
  %613 = vmatpush.msra.mxu0 %v476
  %614 = vmatpush.msra.mxu0 %v475
  %615 = vmatpush.msra.mxu0 %v474
  %616 = vmatpush.msra.mxu0 %v473
  %617 = vmatpush.msra.mxu0 %v472
  %618 = vmatpush.msra.mxu0 %v471
  %619 = vmatmul.f32.gmra.mxu0 %v448
  %v620 = vpop.f32.mrf.mxu0
  %v621 = vadd.f32 %v601, %v620
  %622 = vdwg.mxu0
  %623 = vmatpush.msra.mxu0 %v502
  %624 = vmatpush.msra.mxu0 %v501
  %625 = vmatpush.msra.mxu0 %v500
  %626 = vmatpush.msra.mxu0 %v499
  %627 = vmatpush.msra.mxu0 %v498
  %628 = vmatpush.msra.mxu0 %v497
  %629 = vmatpush.msra.mxu0 %v496
  %630 = vmatpush.msra.mxu0 %v495
  %631 = vmatpush.msra.mxu0 %v494
  %632 = vmatpush.msra.mxu0 %v493
  %633 = vmatpush.msra.mxu0 %v492
  %634 = vmatpush.msra.mxu0 %v491
  %635 = vmatpush.msra.mxu0 %v490
  %636 = vmatpush.msra.mxu0 %v489
  %637 = vmatpush.msra.mxu0 %v488
  %638 = vmatpush.msra.mxu0 %v487
  %639 = vmatmul.f32.gmra.mxu0 %v449
  %v640 = vpop.f32.mrf.mxu0
  %v641 = vadd.f32 %v621, %v640
  %642 = vdwg.mxu0
  %643 = vmatpush.msra.mxu0 %v518
  %644 = vmatpush.msra.mxu0 %v517
  %645 = vmatpush.msra.mxu0 %v516
  %646 = vmatpush.msra.mxu0 %v515
  %647 = vmatpush.msra.mxu0 %v514
  %648 = vmatpush.msra.mxu0 %v513
  %649 = vmatpush.msra.mxu0 %v512
  %650 = vmatpush.msra.mxu0 %v511
  %651 = vmatpush.msra.mxu0 %v510
  %652 = vmatpush.msra.mxu0 %v509
  %653 = vmatpush.msra.mxu0 %v508
  %654 = vmatpush.msra.mxu0 %v507
  %655 = vmatpush.msra.mxu0 %v506
  %656 = vmatpush.msra.mxu0 %v505
  %657 = vmatpush.msra.mxu0 %v504
  %658 = vmatpush.msra.mxu0 %v503
  %659 = vmatmul.f32.gmra.mxu0 %v450
  %v660 = vpop.f32.mrf.mxu0
  %v661 = vadd.f32 %v641, %v660
  %662 = vdwg.mxu0
  %663 = vmatpush.msra.mxu0 %v534
  %664 = vmatpush.msra.mxu0 %v533
  %665 = vmatpush.msra.mxu0 %v532
  %666 = vmatpush.msra.mxu0 %v531
  %667 = vmatpush.msra.mxu0 %v530
  %668 = vmatpush.msra.mxu0 %v529
  %669 = vmatpush.msra.mxu0 %v528
  %670 = vmatpush.msra.mxu0 %v527
  %671 = vmatpush.msra.mxu0 %v526
  %672 = vmatpush.msra.mxu0 %v525
  %673 = vmatpush.msra.mxu0 %v524
  %674 = vmatpush.msra.mxu0 %v523
  %675 = vmatpush.msra.mxu0 %v522
  %676 = vmatpush.msra.mxu0 %v521
  %677 = vmatpush.msra.mxu0 %v520
  %678 = vmatpush.msra.mxu0 %v519
  %679 = vmatmul.f32.gmra.mxu0 %v451
  %v680 = vpop.f32.mrf.mxu0
  %v681 = vadd.f32 %v661, %v680
  %682 = vdwg.mxu0
  %683 = vmatpush.msra.mxu0 %v550
  %684 = vmatpush.msra.mxu0 %v549
  %685 = vmatpush.msra.mxu0 %v548
  %686 = vmatpush.msra.mxu0 %v547
  %687 = vmatpush.msra.mxu0 %v546
  %688 = vmatpush.msra.mxu0 %v545
  %689 = vmatpush.msra.mxu0 %v544
  %690 = vmatpush.msra.mxu0 %v543
  %691 = vmatpush.msra.mxu0 %v542
  %692 = vmatpush.msra.mxu0 %v541
  %693 = vmatpush.msra.mxu0 %v540
  %694 = vmatpush.msra.mxu0 %v539
  %695 = vmatpush.msra.mxu0 %v538
  %696 = vmatpush.msra.mxu0 %v537
  %697 = vmatpush.msra.mxu0 %v536
  %698 = vmatpush.msra.mxu0 %v535
  %699 = vmatmul.f32.gmra.mxu0 %v452
  %v700 = vpop.f32.mrf.mxu0
  %v701 = vadd.f32 %v681, %v700
  %702 = vdwg.mxu0
  %703 = vmatpush.msra.mxu0 %v566
  %704 = vmatpush.msra.mxu0 %v565
  %705 = vmatpush.msra.mxu0 %v564
  %706 = vmatpush.msra.mxu0 %v563
  %707 = vmatpush.msra.mxu0 %v562
  %708 = vmatpush.msra.mxu0 %v561
  %709 = vmatpush.msra.mxu0 %v560
  %710 = vmatpush.msra.mxu0 %v559
  %711 = vmatpush.msra.mxu0 %v558
  %712 = vmatpush.msra.mxu0 %v557
  %713 = vmatpush.msra.mxu0 %v556
  %714 = vmatpush.msra.mxu0 %v555
  %715 = vmatpush.msra.mxu0 %v554
  %716 = vmatpush.msra.mxu0 %v553
  %717 = vmatpush.msra.mxu0 %v552
  %718 = vmatpush.msra.mxu0 %v551
  %719 = vmatmul.f32.gmra.mxu0 %v453
  %v720 = vpop.f32.mrf.mxu0
  %v721 = vadd.f32 %v701, %v720
  %722 = vdwg.mxu0
  %723 = vmatpush.msra.mxu0 %v582
  %724 = vmatpush.msra.mxu0 %v581
  %725 = vmatpush.msra.mxu0 %v580
  %726 = vmatpush.msra.mxu0 %v579
  %727 = vmatpush.msra.mxu0 %v578
  %728 = vmatpush.msra.mxu0 %v577
  %729 = vmatpush.msra.mxu0 %v576
  %730 = vmatpush.msra.mxu0 %v575
  %731 = vmatpush.msra.mxu0 %v574
  %732 = vmatpush.msra.mxu0 %v573
  %733 = vmatpush.msra.mxu0 %v572
  %734 = vmatpush.msra.mxu0 %v571
  %735 = vmatpush.msra.mxu0 %v570
  %736 = vmatpush.msra.mxu0 %v569
  %737 = vmatpush.msra.mxu0 %v568
  %738 = vmatpush.msra.mxu0 %v567
  %739 = vmatmul.f32.gmra.mxu0 %v454
  %v740 = vpop.f32.mrf.mxu0
  %v741 = vadd.f32 %v721, %v740
  %742 = vdwg.mxu0
  %v743 = vtanh.pop %v741
  %v744 = vmul.f32 %v743, 10.0
  %v745 = vld [vmem:[%s2] sm:$0x3]
  %vm746 = vcmp.eq.s32.totalorder %v745, 0
  %v747 = vsel %vm746, %v744, -1e+30
  %vm748 = vcmask 254976
  %v749 = vsel %vm748, %v747, -inf
  %750 = vmax.xlane.f32.xlu0 %v749
  %v751 = vpop.xlane.xlu0 %750
  %v752 = vsub.f32 %v747, %v751
  %v753 = vmul.f32 %v752, 1.442695
  %v754 = vpow.pop %v753
  %v755 = vsel %vm748, %v754, 0.0
  %756 = vadd.xlane.f32.xlu0 %v755
  %v757 = vpop.xlane.xlu0 %756
  %v758 = vlaneseq
  %v759 = vand.u32 %v758, 127
  %vm760 = vcmp.eq.f32.partialorder %v747, %v751
  %v761 = vsel %vm760, %v759, 32
  %v762 = vsel %vm748, %v761, 2147483647
  %v763 = vand.u32 %v762, 65535
  %v764 = vshra.s32 %v762, 16
  %v765 = vcvt.s32.f32 %v763
  %v766 = vcvt.s32.f32 %v764
  %767 = vmin.xlane.f32.xlu0 %v766
  %v768 = vpop.xlane.xlu0 %767
  %vm769 = vcmp.eq.f32.partialorder %v766, %v768
  %v770 = vsel %vm769, %v765, inf
  %771 = vmin.xlane.f32.xlu0 %v770
  %v772 = vpop.xlane.xlu0 %771
  %v773 = vcvt.f32.s32 %v772
  %v774 = vcvt.f32.s32 %v768
  %v775 = vshll.u32 %v774, 16
  %v776 = vadd.s32 %v775, %v773
  %vm777 = vcmask 1024
  %778 = vst.msk [vmem:[%s7] sm:$0x3] %vm777, %v776
  %v779 = vrcp.pop %v757
  %v780 = vmul.f32 %v757, %v779
  %v781 = vsub.f32 1.0, %v780
  %v782 = vmul.f32 %v779, %v781
  %v783 = vadd.f32 %v779, %v782
  %vm784 = vweird.f32 %v757
  %vm785 = vweird.f32 %v779
  %vm786 = vmor %vm784, %vm785
  %v787 = vsel %vm786, %v779, %v783
  %v788 = vand.u32 2147483647, %v757
  %vm789 = vcmp.eq.f32.partialorder %v788, 8.507059e+37
  %v790 = vand.u32 %v757, 2147483648
  %v791 = vor.u32 1.1754944e-38, %v790
  %v792 = vsel %vm789, %v791, %v787
  %v793 = vmul.f32 1.0, %v792
  %794 = vst.msk [vmem:[%s8] sm:$0x3] %vm777, %v793
  // Predicated region
  $region30: #{tpu_custom_call.1} parent=0 // pred_check
    _
  $region31: #{tpu_custom_call.1} parent=0 // pred_check_branch
    %796 = sbr.rel (0) target = $region33
  $region32: #{tpu_custom_call.1} parent=0 // pred_region
    _
  $region33: #{tpu_custom_call.1} parent=0 // pred_fallthru
    _
  // Predicated region
  $region34: #{tpu_custom_call.1} parent=0 // pred_check
    _
  $region35: #{tpu_custom_call.1} parent=0 // pred_check_branch
    %798 = sbr.rel (0) target = $region37
  $region36: #{tpu_custom_call.1} parent=0 // pred_region
    _
  $region37: #{tpu_custom_call.1} parent=0 // pred_fallthru
    _
  // Predicated region
  $region38: #{tpu_custom_call.1} parent=0 // pred_check
    _
  $region39: #{tpu_custom_call.1} parent=0 // pred_check_branch
    %800 = sbr.rel (0) target = $region41
  $region40: #{tpu_custom_call.1} parent=0 // pred_region
    _
  $region41: #{tpu_custom_call.1} parent=0 // pred_fallthru
    _
  // Predicated region
  $region42: #{tpu_custom_call.1} parent=0 // pred_check
    _
  $region43: #{tpu_custom_call.1} parent=0 // pred_check_branch
    %802 = sbr.rel (0) target = $region45
  $region44: #{tpu_custom_call.1} parent=0 // pred_region
    _
  $region45: #{tpu_custom_call.1} parent=0 // pred_fallthru
    _

</llo_original>
